<compile_context>
chip_gen: v5e
topology: v5e:2x2
jax: 0.10.0
libtpu: 0.0.40
codegen_flags: <defaults>
</compile_context>

<pallas_src>
import jax
import jax.numpy as jnp
from jax.experimental import pallas as pl
from jax.experimental.pallas import tpu as pltpu

_LANE = 128
_SUBLANE = 8


def _round_up(n, m):
    return ((n + m - 1) // m) * m


def _cdiv(a, b):
    return (a + b - 1) // b


def _mlp_kernel(x_ref, w1_ref, b1_ref, w2_ref, b2_ref, o_ref):
    # Fused fc1 -> bias -> ReLU -> fc2 -> bias, all VMEM-resident.
    x = x_ref[...].astype(jnp.bfloat16)                               # [TB, I] cast in-kernel
    h = jnp.dot(x, w1_ref[...], preferred_element_type=jnp.float32)   # [TB, Hp] f32 acc (MXU)
    h = jnp.maximum(h + b1_ref[...], 0.0)                             # bias + ReLU (VPU)
    y = jnp.dot(h.astype(jnp.bfloat16), w2_ref[...],
                preferred_element_type=jnp.float32)                   # [TB, O] f32 acc (MXU)
    o_ref[...] = (y + b2_ref[...]).astype(o_ref.dtype)


def _batch_tiling(B, block_b):
    """Balanced batch tiles: multiple-of-8 rows, padding < one sublane group per
    tile, and >= 2 tiles once B is non-trivial (v7x has 2 TensorCores)."""
    n_tiles = _cdiv(B, block_b)
    if B > 2 * _SUBLANE:
        n_tiles = max(n_tiles, 2)
    TB = _round_up(_cdiv(B, n_tiles), _SUBLANE)
    grid = _cdiv(B, TB)          # last tile may be partial; Pallas masks it
    return TB, grid


def neural_net_forward(x, w1, b1, w2, b2, *, block_b=4096):
    """x: [B, I]; w1: [I, H]; b1: [1, H]; w2: [H, O]; b2: [1, O]  ->  [B, O]."""
    B, I = x.shape
    H = w1.shape[1]
    O = w2.shape[1]

    # Only the hidden (internal) dim is padded to a lane-dense 128; I and O stay
    # at their true widths (both equal the full last dim of their arrays, which
    # keeps the BlockSpecs legal and the HBM traffic minimal).
    Hp = _round_up(H, _LANE)
    TB, grid = _batch_tiling(B, block_b)

    # One-time, few-KiB weight/bias prep (zero padding keeps the math exact:
    # padded hidden cols are relu(0) = 0 and meet zero rows of w2).
    w1p = jnp.pad(w1, ((0, 0), (0, Hp - H))).astype(jnp.bfloat16)     # [I, Hp]
    b1p = jnp.pad(b1, ((0, 0), (0, Hp - H))).astype(jnp.float32)      # [1, Hp]
    w2p = jnp.pad(w2, ((0, Hp - H), (0, 0))).astype(jnp.bfloat16)     # [Hp, O]
    b2p = b2.astype(jnp.float32)                                       # [1, O]

    # Advisory cost estimate (true problem size, both matmuls).
    flops = 2 * B * (I * Hp + Hp * O)
    bytes_accessed = (x.size * x.dtype.itemsize + B * O * 4
                      + w1p.size * 2 + w2p.size * 2 + b1p.size * 4 + b2p.size * 4)

    # VMEM budget: double-buffered x/out tiles, resident weights/biases (x2 for
    # the unused second pipeline buffer), f32 h + bf16 cast temps. Floor 16 MiB.
    io_bytes = 2 * TB * I * 4 + 2 * TB * O * 4
    itm_bytes = TB * Hp * 4 + TB * Hp * 2 + TB * I * 2
    wgt_bytes = 2 * (w1p.size * 2 + w2p.size * 2 + b1p.size * 4 + b2p.size * 4)
    vmem_limit = int(min(max(2 * (io_bytes + itm_bytes + wgt_bytes), 16 << 20), 32 << 20))

    out = pl.pallas_call(
        _mlp_kernel,
        out_shape=jax.ShapeDtypeStruct((B, O), x.dtype),
        grid=(grid,),
        in_specs=[
            pl.BlockSpec((TB, I), lambda i: (i, 0)),    # x: batch-tiled, true width
            pl.BlockSpec((I, Hp), lambda i: (0, 0)),    # w1: VMEM-resident
            pl.BlockSpec((1, Hp), lambda i: (0, 0)),    # b1: VMEM-resident
            pl.BlockSpec((Hp, O), lambda i: (0, 0)),    # w2: VMEM-resident
            pl.BlockSpec((1, O), lambda i: (0, 0)),     # b2: VMEM-resident
        ],
        out_specs=pl.BlockSpec((TB, O), lambda i: (i, 0)),   # true-width output
        compiler_params=pltpu.CompilerParams(
            dimension_semantics=("parallel",),
            vmem_limit_bytes=vmem_limit,
        ),
        cost_estimate=pl.CostEstimate(
            flops=flops, transcendentals=0, bytes_accessed=bytes_accessed),
    )(x, w1p, b1p, w2p, b2p)

    return out


def init_params(key, input_size, hidden_size, output_size):
    """Deterministic init mirroring nn.Linear shapes (weights stored transposed)."""
    k1, k2, k3, k4 = jax.random.split(key, 4)
    bound1 = 1.0 / jnp.sqrt(input_size)
    bound2 = 1.0 / jnp.sqrt(hidden_size)
    w1 = jax.random.uniform(k1, (input_size, hidden_size), jnp.float32, -bound1, bound1)
    b1 = jax.random.uniform(k2, (1, hidden_size), jnp.float32, -bound1, bound1)
    w2 = jax.random.uniform(k3, (hidden_size, output_size), jnp.float32, -bound2, bound2)
    b2 = jax.random.uniform(k4, (1, output_size), jnp.float32, -bound2, bound2)
    return w1, b1, w2, b2


if __name__ == "__main__":
    # Small synthetic sizes consistent with the module (bag-of-words classifier style).
    batch, input_size, hidden_size, output_size = 8, 32, 64, 16

    key = jax.random.PRNGKey(0)
    kx, kp = jax.random.split(key)
    x = jax.random.normal(kx, (batch, input_size), jnp.float32)
    w1, b1, w2, b2 = init_params(kp, input_size, hidden_size, output_size)

    fwd = jax.jit(neural_net_forward)
    out = fwd(x, w1, b1, w2, b2)
    jax.block_until_ready(out)

    # Reference 1: matches the kernel's bf16-operand / f32-accumulate numerics.
    up = lambda a: a.astype(jnp.bfloat16).astype(jnp.float32)
    h_ref = jnp.maximum(up(x) @ up(w1) + b1, 0.0)
    ref_bf16 = up(h_ref) @ up(w2) + b2
    # Reference 2: pure f32 forward (loose tolerance for bf16 rounding).
    ref_f32 = jnp.maximum(x @ w1 + b1, 0.0) @ w2 + b2

    assert out.shape == (batch, output_size)
    assert jnp.allclose(out, ref_bf16, atol=2e-2, rtol=2e-2)
    assert jnp.allclose(out, ref_f32, atol=5e-2, rtol=5e-2)

    print("KERNEL_OK")
</pallas_src>

<mosaic_0001>
module attributes {stable_mosaic.version = 11 : i64} {
  func.func @_mlp_kernel(%arg0: i32, %arg1: memref<8x32xf32, #tpu.memory_space<vmem>>, %arg2: memref<32x128xbf16, #tpu.memory_space<vmem>>, %arg3: memref<1x128xf32, #tpu.memory_space<vmem>>, %arg4: memref<128x16xbf16, #tpu.memory_space<vmem>>, %arg5: memref<1x16xf32, #tpu.memory_space<vmem>>, %arg6: memref<8x16xf32, #tpu.memory_space<vmem>>) attributes {dimension_semantics = [#tpu.dimension_semantics<parallel>], iteration_bounds = array<i64: 1>, scalar_prefetch = 0 : i64, scratch_operands = 0 : i64, tpu.core_type = #tpu.core_type<tc>, window_params = [{transform_indices = @transform_0, window_bounds = array<i64: 8, 32>}, {pipeline_mode = #tpu.pipeline_mode<synchronous>, transform_indices = @transform_1, window_bounds = array<i64: 32, 128>}, {pipeline_mode = #tpu.pipeline_mode<synchronous>, transform_indices = @transform_2, window_bounds = array<i64: 1, 128>}, {pipeline_mode = #tpu.pipeline_mode<synchronous>, transform_indices = @transform_3, window_bounds = array<i64: 128, 16>}, {pipeline_mode = #tpu.pipeline_mode<synchronous>, transform_indices = @transform_4, window_bounds = array<i64: 1, 16>}, {transform_indices = @transform_5, window_bounds = array<i64: 8, 16>}]} {
    %c0 = arith.constant 0 : index
    %c0_0 = arith.constant 0 : index
    %0 = vector.load %arg1[%c0, %c0_0] : memref<8x32xf32, #tpu.memory_space<vmem>>, vector<8x32xf32>
    %1 = arith.truncf %0 : vector<8x32xf32> to vector<8x32xbf16>
    %c0_1 = arith.constant 0 : index
    %c0_2 = arith.constant 0 : index
    %2 = vector.load %arg2[%c0_1, %c0_2] : memref<32x128xbf16, #tpu.memory_space<vmem>>, vector<32x128xbf16>
    %cst = arith.constant dense<0.000000e+00> : vector<8x128xf32>
    %3 = tpu.matmul %1, %2, %cst {dimension_numbers = #tpu.dot_dimension_numbers<[1], [0], [0], [1], [0, 0, 1, 1], [], []>} : vector<8x32xbf16>, vector<32x128xbf16>, vector<8x128xf32> -> vector<8x128xf32>
    %c0_3 = arith.constant 0 : index
    %c0_4 = arith.constant 0 : index
    %4 = vector.load %arg3[%c0_3, %c0_4] : memref<1x128xf32, #tpu.memory_space<vmem>>, vector<1x128xf32>
    %5 = vector.broadcast %4 : vector<1x128xf32> to vector<8x128xf32>
    %6 = arith.addf %3, %5 : vector<8x128xf32>
    %cst_5 = arith.constant 0.000000e+00 : f32
    %7 = vector.broadcast %cst_5 : f32 to vector<8x128xf32>
    %8 = arith.maximumf %6, %7 : vector<8x128xf32>
    %9 = arith.truncf %8 : vector<8x128xf32> to vector<8x128xbf16>
    %c0_6 = arith.constant 0 : index
    %c0_7 = arith.constant 0 : index
    %10 = vector.load %arg4[%c0_6, %c0_7] : memref<128x16xbf16, #tpu.memory_space<vmem>>, vector<128x16xbf16>
    %cst_8 = arith.constant dense<0.000000e+00> : vector<8x16xf32>
    %11 = tpu.matmul %9, %10, %cst_8 {dimension_numbers = #tpu.dot_dimension_numbers<[1], [0], [0], [1], [0, 0, 1, 1], [], []>} : vector<8x128xbf16>, vector<128x16xbf16>, vector<8x16xf32> -> vector<8x16xf32>
    %c0_9 = arith.constant 0 : index
    %c0_10 = arith.constant 0 : index
    %12 = vector.load %arg5[%c0_9, %c0_10] : memref<1x16xf32, #tpu.memory_space<vmem>>, vector<1x16xf32>
    %13 = vector.broadcast %12 : vector<1x16xf32> to vector<8x16xf32>
    %14 = arith.addf %11, %13 : vector<8x16xf32>
    %c0_11 = arith.constant 0 : index
    %c0_12 = arith.constant 0 : index
    %15 = vector.load %arg6[%c0_11, %c0_12] : memref<8x16xf32, #tpu.memory_space<vmem>>, vector<8x16xf32>
    tpu.vector_store %arg6[%c0_11, %c0_12], %14 {strides = array<i32>} : memref<8x16xf32, #tpu.memory_space<vmem>>, vector<8x16xf32>,
    return
  }
  func.func @transform_0(%arg0: i32) -> (i32, i32) {
    %c0_i32 = arith.constant 0 : i32
    %c0_i32_0 = arith.constant 0 : i32
    return %arg0, %c0_i32 : i32, i32
  }
  func.func @transform_1(%arg0: i32) -> (i32, i32) {
    %c0_i32 = arith.constant 0 : i32
    %c0_i32_0 = arith.constant 0 : i32
    %c0_i32_1 = arith.constant 0 : i32
    return %c0_i32, %c0_i32_0 : i32, i32
  }
  func.func @transform_2(%arg0: i32) -> (i32, i32) {
    %c0_i32 = arith.constant 0 : i32
    %c0_i32_0 = arith.constant 0 : i32
    %c0_i32_1 = arith.constant 0 : i32
    return %c0_i32, %c0_i32_0 : i32, i32
  }
  func.func @transform_3(%arg0: i32) -> (i32, i32) {
    %c0_i32 = arith.constant 0 : i32
    %c0_i32_0 = arith.constant 0 : i32
    %c0_i32_1 = arith.constant 0 : i32
    return %c0_i32, %c0_i32_0 : i32, i32
  }
  func.func @transform_4(%arg0: i32) -> (i32, i32) {
    %c0_i32 = arith.constant 0 : i32
    %c0_i32_0 = arith.constant 0 : i32
    %c0_i32_1 = arith.constant 0 : i32
    return %c0_i32, %c0_i32_0 : i32, i32
  }
  func.func @transform_5(%arg0: i32) -> (i32, i32) {
    %c0_i32 = arith.constant 0 : i32
    %c0_i32_0 = arith.constant 0 : i32
    return %arg0, %c0_i32 : i32, i32
  }
}

</mosaic_0001>

<llo_original>
// kernel: neural_net_forward.1
$region0: #{neural_net_forward.1}
  #allocation0 [shape = 'u32[]', space=smem, size = 0x4, offset = 0x4, fixed_abs, tag = 'smem constant byte address 0x4 - core index']
  #allocation1 [shape = 'u32[72,128]{1,0:T(1,128)}', space=vmem, size = 0x9000, scoped, tag = 'internal scratch']
  %s0 = inlined_call_operand.vmem [shape: f32[8,32], index: 0, kind: input, shape index: {}]
  %s1 = inlined_call_operand.vmem [shape: bf16[32,128], index: 1, kind: input, shape index: {}]
  %s2 = inlined_call_operand.vmem [shape: f32[1,128], index: 2, kind: input, shape index: {}]
  %s3 = inlined_call_operand.vmem [shape: bf16[128,16], index: 3, kind: input, shape index: {}]
  %s4 = inlined_call_operand.vmem [shape: f32[1,16], index: 4, kind: input, shape index: {}]
  %s5 = inlined_call_operand.hbm [shape: f32[8,16], index: 5, kind: output, shape index: {}]
  %s6 = sld [smem:[#allocation0]]
  $region30: #{neural_net_forward.1} parent=0
    _
  %s8 = ssub.s32 1, %s6
  %s9 = scalar_select 0, %s8, %s6
  $region1: #{neural_net_forward.1} parent=0
    #allocation2 [shape = 'u8[4096]{0}', space=vmem, size = 0x1000, scoped, tag = 'output window, operand 0, single buffered']
    #allocation3 [shape = 's32[1]{0}', space=sflag, size = 0x4, scoped, tag = 'scoped memory for neural_net_forward.1']
    %10 = vsyncpa [#allocation3], 0
    // Predicated region
    $region2: #{neural_net_forward.1} parent=1 // pred_check
      _
    $region3: #{neural_net_forward.1} parent=1 // pred_check_branch
      %12 = sbr.rel (0) target = $region5
    $region4: #{neural_net_forward.1} parent=1 // pred_region
      _
    $region5: #{neural_net_forward.1} parent=1 // pred_fallthru
      _
    // Predicated region
    $region6: #{neural_net_forward.1} parent=1 // pred_check
      _
    $region7: #{neural_net_forward.1} parent=1 // pred_check_branch
      %14 = sbr.rel (0) target = $region9
    $region8: #{neural_net_forward.1} parent=1 // pred_region
      _
    $region9: #{neural_net_forward.1} parent=1 // pred_fallthru
      _
    // Predicated region
    $region10: #{neural_net_forward.1} parent=1 // pred_check
      _
    $region11: #{neural_net_forward.1} parent=1 // pred_check_branch
      %16 = sbr.rel (0) target = $region13
    $region12: #{neural_net_forward.1} parent=1 // pred_region
      _
    $region13: #{neural_net_forward.1} parent=1 // pred_fallthru
      _
    // Predicated region
    $region14: #{neural_net_forward.1} parent=1 // pred_check
      _
    $region15: #{neural_net_forward.1} parent=1 // pred_check_branch
      %18 = sbr.rel (0) target = $region17
    $region16: #{neural_net_forward.1} parent=1 // pred_region
      _
    $region17: #{neural_net_forward.1} parent=1 // pred_fallthru
      _
    // Predicated region
    $region18: #{neural_net_forward.1} parent=1 // pred_check
      _
    $region19: #{neural_net_forward.1} parent=1 // pred_check_branch
      %20 = sbr.rel (0) target = $region21
    $region20: #{neural_net_forward.1} parent=1 // pred_region
      _
    $region21: #{neural_net_forward.1} parent=1 // pred_fallthru
      _
    %v22 = vld [vmem:[%s0] sm:$0xff]
    %v23 = vpack.c.bf16 %v22, %v22
    %v24 = vld [vmem:[%s1] sm:$0xf]
    %v25 = vld [vmem:[%s1 + $0x4] sm:$0xf]
    %v26 = vld [vmem:[%s1 + $0x8] sm:$0xf]
    %v27 = vld [vmem:[%s1 + $0xc] sm:$0xf]
    %v28 = vld [vmem:[%s2] sm:$0x1]
    %v30 = vperm.slane %v28, 0
    %v36 = vunpack.c.l.b16 %v24
    %v37 = vunpack.c.l.b16 %v25
    %v38 = vunpack.c.l.b16 %v26
    %v39 = vunpack.c.l.b16 %v27
    %v40 = vpack.c.b16 %v37, %v36
    %v41 = vpack.c.b16 %v39, %v38
    %vm44 = vcmask 261120
    %v46 = vsel %vm44, %v23, 0
    %48 = vmatpush.bf16.msra.mxu0 0
    %49 = vmatpush.bf16.msra.mxu0 0
    %50 = vmatpush.bf16.msra.mxu0 0
    %51 = vmatpush.bf16.msra.mxu0 0
    %52 = vmatpush.bf16.msra.mxu0 0
    %53 = vmatpush.bf16.msra.mxu0 0
    %54 = vmatpush.bf16.msra.mxu0 %v41
    %55 = vmatpush.bf16.msra.mxu0 %v40
    %56 = vmatmul.bf16.gmra.mxu0 %v46
    %v57 = vpop.f32.mrf.mxu0
    %v58 = vadd.f32 %v30, %v57
    %v59 = vpop.f32.mrf.mxu0
    %60 = vdwg.mxu0
    %v61 = vmax.f32 %v58, 0.0
    %v62 = vpack.c.bf16 %v61, %v61
    %v63 = vld [vmem:[%s3] sm:$0xf]
    %v64 = vld [vmem:[%s3 + $0x4] sm:$0xf]
    %v65 = vld [vmem:[%s3 + $0x8] sm:$0xf]
    %v66 = vld [vmem:[%s3 + $0xc] sm:$0xf]
    %v67 = vld [vmem:[%s3 + $0x10] sm:$0xf]
    %v68 = vld [vmem:[%s3 + $0x14] sm:$0xf]
    %v69 = vld [vmem:[%s3 + $0x18] sm:$0xf]
    %v70 = vld [vmem:[%s3 + $0x1c] sm:$0xf]
    %v71 = vld [vmem:[%s3 + $0x20] sm:$0xf]
    %v72 = vld [vmem:[%s3 + $0x24] sm:$0xf]
    %v73 = vld [vmem:[%s3 + $0x28] sm:$0xf]
    %v74 = vld [vmem:[%s3 + $0x2c] sm:$0xf]
    %v75 = vld [vmem:[%s3 + $0x30] sm:$0xf]
    %v76 = vld [vmem:[%s3 + $0x34] sm:$0xf]
    %v77 = vld [vmem:[%s3 + $0x38] sm:$0xf]
    %v78 = vld [vmem:[%s3 + $0x3c] sm:$0xf]
    %v79 = vld [vmem:[%s4] sm:$0x1]
    %v81 = vperm.slane %v79, 0
    %v99 = vunpack.c.l.b16 %v63
    %v100 = vunpack.c.l.b16 %v64
    %v101 = vunpack.c.l.b16 %v65
    %v102 = vunpack.c.l.b16 %v66
    %v103 = vunpack.c.l.b16 %v67
    %v104 = vunpack.c.l.b16 %v68
    %v105 = vunpack.c.l.b16 %v69
    %v106 = vunpack.c.l.b16 %v70
    %v107 = vunpack.c.l.b16 %v71
    %v108 = vunpack.c.l.b16 %v72
    %v109 = vunpack.c.l.b16 %v73
    %v110 = vunpack.c.l.b16 %v74
    %v111 = vunpack.c.l.b16 %v75
    %v112 = vunpack.c.l.b16 %v76
    %v113 = vunpack.c.l.b16 %v77
    %v114 = vunpack.c.l.b16 %v78
    %v115 = vpack.c.b16 %v100, %v99
    %v116 = vpack.c.b16 %v102, %v101
    %v117 = vpack.c.b16 %v104, %v103
    %v118 = vpack.c.b16 %v106, %v105
    %v119 = vpack.c.b16 %v108, %v107
    %v120 = vpack.c.b16 %v110, %v109
    %v121 = vpack.c.b16 %v112, %v111
    %v122 = vpack.c.b16 %v114, %v113
    %131 = vmatpush.bf16.msra.mxu0 %v122
    %132 = vmatpush.bf16.msra.mxu0 %v121
    %133 = vmatpush.bf16.msra.mxu0 %v120
    %134 = vmatpush.bf16.msra.mxu0 %v119
    %135 = vmatpush.bf16.msra.mxu0 %v118
    %136 = vmatpush.bf16.msra.mxu0 %v117
    %137 = vmatpush.bf16.msra.mxu0 %v116
    %138 = vmatpush.bf16.msra.mxu0 %v115
    %139 = vmatmul.bf16.gmra.mxu0 %v62
    %v140 = vpop.f32.mrf.mxu0
    %v141 = vadd.f32 %v81, %v140
    %v142 = vpop.f32.mrf.mxu0
    %143 = vdwg.mxu0
    %vm144 = vcmask 130048
    %145 = vst.msk [vmem:[#allocation2] sm:$0xff] %vm144, %v141
    // Predicated region
    $region22: #{neural_net_forward.1} parent=1 // pred_check
      _
    $region23: #{neural_net_forward.1} parent=1 // pred_check_branch
      %147 = sbr.rel (0) target = $region25
    $region24: #{neural_net_forward.1} parent=1 // pred_region
      %149 = vsyncadd [#allocation3], 0
      %s151 = sshll.u32 [#allocation2], 4
      %s152 = int_to_ptr.vmem [resolvable:$true] %s151
      %s153 = sshll.u32 %s5, 4
      %s154 = int_to_ptr.hbm [resolvable:$true] %s153
      %156 = dma.vmem_to_hbm [thread:$0]  %s152, 128, %s154, [#allocation3]
    $region25: #{neural_net_forward.1} parent=1 // pred_fallthru
      _
    // Predicated region
    $region26: #{neural_net_forward.1} parent=1 // pred_check
      _
    $region27: #{neural_net_forward.1} parent=1 // pred_check_branch
      %158 = sbr.rel (0) target = $region29
    $region28: #{neural_net_forward.1} parent=1 // pred_region
      %160 = dma.done [#allocation3], 128
    $region29: #{neural_net_forward.1} parent=1 // pred_fallthru
      _
    %161 = vsyncpa [#allocation3], 1

</llo_original>
